<compile_context>
chip_gen: v6e
topology: v6e:2x2x1
jax: 0.10.0
libtpu: 0.0.40
codegen_flags: <defaults>
</compile_context>

<pallas_src>
import math
import functools

import jax
import jax.numpy as jnp
from jax.experimental import pallas as pl
from jax.experimental.pallas import tpu as pltpu


def large_loss_kernel(x_ref, t_ref, out_ref, *, margin, k, exact_topk=True):
    # Upcast in VMEM (no wrapper-side cast): one HBM pass per input array.
    x = x_ref[...].astype(jnp.float32)
    t = t_ref[...].astype(jnp.float32)

    # Shared BCE-with-logits terms (one exp + one log1p per element):
    #   bce(x, t)   = max(x,0) - x*t + log1p(exp(-|x|))
    #   bce(-x, -t) = bce(x, t) - x
    sp = jnp.log1p(jnp.exp(-jnp.abs(x)))
    pos_loss = jnp.maximum(x, 0.0) - x * t + sp
    neg_loss = pos_loss - x

    # Only `pos_part` and `unobs` (plus its free int32 bit view) need to stay
    # live across the bisection loop; everything above is dead afterwards.
    pos_part = jnp.where(t > margin, pos_loss, 0.0)
    unobs = jnp.where(t < -margin, neg_loss, 0.0)   # >= 0 everywhere

    if k > 0:
        # Exact k-th largest of flattened `unobs` via bisection (count-select)
        # on the int32 bit pattern — monotone since unobs is non-negative.
        # Scalar-only (lo, hi) carry, one XLU reduction per step.
        bits = pltpu.bitcast(unobs, jnp.int32)
        if exact_topk:
            search_bits, steps, hi0 = bits, 31, jnp.int32(0x7FFFFFFF)
        else:
            # Reduced precision (opt-in): bisect the top 16 bits of the f32
            # pattern (threshold quantized to ~bf16 granularity), halving the
            # per-step work and the serial reduce->scalar->broadcast chain.
            search_bits, steps, hi0 = bits >> 16, 15, jnp.int32(0x8000)

        def body(_, carry):
            lo, hi = carry
            mid = lo + ((hi - lo) >> 1)
            ge = jnp.sum((search_bits >= mid).astype(jnp.int32)) >= k
            return jnp.where(ge, mid, lo), jnp.where(ge, hi, mid)

        lo, _ = jax.lax.fori_loop(0, steps, body, (jnp.int32(0), hi0),
                                  unroll=True)

        # Strict '<' like the PyTorch code: ties at the threshold are dropped.
        neg_part = jnp.where(search_bits < lo, unobs, 0.0)
    else:
        neg_part = unobs

    out_ref[...] = (pos_part + neg_part).astype(out_ref.dtype)


def large_loss(inputs, target, *, margin=0.0, llr_rel=0.9, exact_topk=True):
    """Equivalent of LargeLoss(margin).forward(input, target, llr_rel=llr_rel)
    with reduce=None: returns the (batch, classNum) element-wise loss (f32)."""
    batch, class_num = target.shape
    n = batch * class_num
    k = math.ceil(n * (1.0 - llr_rel))          # static Python int
    k = max(0, min(int(k), n))

    kernel = functools.partial(large_loss_kernel, margin=float(margin),
                               k=k, exact_topk=bool(exact_topk))

    steps = 31 if exact_topk else 15
    in_bytes = n * (inputs.dtype.itemsize + target.dtype.itemsize)
    out_bytes = 4 * n
    cost = pl.CostEstimate(
        flops=(10 + (3 * steps if k > 0 else 0)) * n,
        transcendentals=2 * n,                   # 1 exp + 1 log1p per element
        bytes_accessed=in_bytes + out_bytes)

    # Resident VMEM: native-dtype inputs + f32 output + the two f32
    # intermediates (unobs / pos_part) alive across the loop + headroom.
    vmem_needed = in_bytes + out_bytes + 8 * n + (2 << 20)
    try:
        vmem_cap = int(pltpu.get_tpu_info().vmem_capacity_bytes)
    except Exception:                            # pragma: no cover
        vmem_cap = 64 << 20                      # conservative (v7x) fallback
    vmem_limit = int(min(max(vmem_needed, 4 << 20), vmem_cap - (8 << 20)))

    # No grid: whole arrays resident in VMEM (single-buffered, no pipelining).
    return pl.pallas_call(
        kernel,
        out_shape=jax.ShapeDtypeStruct((batch, class_num), jnp.float32),
        in_specs=[pl.BlockSpec(memory_space=pltpu.MemorySpace.VMEM),
                  pl.BlockSpec(memory_space=pltpu.MemorySpace.VMEM)],
        out_specs=pl.BlockSpec(memory_space=pltpu.MemorySpace.VMEM),
        compiler_params=pltpu.CompilerParams(vmem_limit_bytes=vmem_limit),
        cost_estimate=cost,
    )(inputs, target)


def _ref_large_loss(x, t, *, margin=0.0, llr_rel=0.9):
    """Pure-JAX reference mirroring the PyTorch module (reduce=None)."""
    x = x.astype(jnp.float32)
    t = t.astype(jnp.float32)
    b, c = t.shape
    pos_mask = (t > margin).astype(jnp.float32)
    neg_mask = (t < -margin).astype(jnp.float32)
    bce = lambda z, y: (jnp.maximum(z, 0.0) - z * y
                        + jnp.log1p(jnp.exp(-jnp.abs(z))))
    pos_loss = bce(x, t)
    neg_loss = bce(-x, -t)
    unobs = neg_mask * neg_loss
    k = math.ceil(b * c * (1 - llr_rel))
    if k != 0:
        thr = jax.lax.top_k(unobs.reshape(-1), k)[0][-1]
        neg_mask = neg_mask * (unobs < thr).astype(jnp.float32)
    return pos_mask * pos_loss + neg_mask * neg_loss


if __name__ == "__main__":
    key = jax.random.PRNGKey(0)
    k1, k2 = jax.random.split(key)

    B, C = 2, 16  # (batchSize, classNum)
    x = jax.random.normal(k1, (B, C), dtype=jnp.float32) * 2.0   # logits
    # multi-label targets in {-1, 0, 1} (negative / unobserved / positive)
    t = jax.random.randint(k2, (B, C), minval=-1, maxval=2).astype(jnp.float32)

    out = large_loss(x, t, margin=0.0, llr_rel=0.9)
    out = jax.block_until_ready(out)

    assert out.shape == (B, C) and out.dtype == jnp.float32

    ref = jax.block_until_ready(_ref_large_loss(x, t, margin=0.0, llr_rel=0.9))
    import numpy as np
    np.testing.assert_allclose(np.asarray(out), np.asarray(ref),
                               rtol=1e-5, atol=1e-5)
    print("KERNEL_OK")
</pallas_src>

<mosaic_0001>
module attributes {stable_mosaic.version = 11 : i64} {
  func.func @large_loss_kernel(%arg0: memref<2x16xf32, #tpu.memory_space<vmem>>, %arg1: memref<2x16xf32, #tpu.memory_space<vmem>>, %arg2: memref<2x16xf32, #tpu.memory_space<vmem>>) attributes {dimension_semantics = [], scalar_prefetch = 0 : i64, scratch_operands = 0 : i64, tpu.core_type = #tpu.core_type<tc>} {
    %c0 = arith.constant 0 : index
    %c0_0 = arith.constant 0 : index
    %0 = vector.load %arg0[%c0, %c0_0] : memref<2x16xf32, #tpu.memory_space<vmem>>, vector<2x16xf32>
    %c0_1 = arith.constant 0 : index
    %c0_2 = arith.constant 0 : index
    %1 = vector.load %arg1[%c0_1, %c0_2] : memref<2x16xf32, #tpu.memory_space<vmem>>, vector<2x16xf32>
    %2 = math.absf %0 : vector<2x16xf32>
    %cst = arith.constant 0.000000e+00 : f32
    %3 = vector.broadcast %cst : f32 to vector<2x16xf32>
    %4 = arith.subf %3, %2 : vector<2x16xf32>
    %5 = math.exp %4 : vector<2x16xf32>
    %6 = math.log1p %5 : vector<2x16xf32>
    %cst_3 = arith.constant 0.000000e+00 : f32
    %7 = vector.broadcast %cst_3 : f32 to vector<2x16xf32>
    %8 = arith.maximumf %0, %7 : vector<2x16xf32>
    %9 = arith.mulf %0, %1 : vector<2x16xf32>
    %10 = arith.subf %8, %9 : vector<2x16xf32>
    %11 = arith.addf %10, %6 : vector<2x16xf32>
    %12 = arith.subf %11, %0 : vector<2x16xf32>
    %cst_4 = arith.constant 0.000000e+00 : f32
    %13 = vector.broadcast %cst_4 : f32 to vector<2x16xf32>
    %14 = arith.cmpf ogt, %1, %13 : vector<2x16xf32>
    %cst_5 = arith.constant 0.000000e+00 : f32
    %15 = vector.broadcast %cst_5 : f32 to vector<2x16xf32>
    %16 = arith.select %14, %11, %15 : vector<2x16xi1>, vector<2x16xf32>
    %cst_6 = arith.constant -0.000000e+00 : f32
    %17 = vector.broadcast %cst_6 : f32 to vector<2x16xf32>
    %18 = arith.cmpf olt, %1, %17 : vector<2x16xf32>
    %cst_7 = arith.constant 0.000000e+00 : f32
    %19 = vector.broadcast %cst_7 : f32 to vector<2x16xf32>
    %20 = arith.select %18, %12, %19 : vector<2x16xi1>, vector<2x16xf32>
    %21 = tpu.bitcast %20 : vector<2x16xf32> -> vector<2x16xi32>
    %c0_i32 = arith.constant 0 : i32
    %c2147483647_i32 = arith.constant 2147483647 : i32
    %c0_i32_8 = arith.constant 0 : i32
    %22 = arith.subi %c2147483647_i32, %c0_i32 : i32
    %c1_i32 = arith.constant 1 : i32
    %23 = arith.shrsi %22, %c1_i32 : i32
    %24 = arith.addi %c0_i32, %23 : i32
    %25 = vector.broadcast %24 : i32 to vector<2x16xi32>
    %26 = arith.cmpi sge, %21, %25 : vector<2x16xi32>
    %27 = arith.extui %26 : vector<2x16xi1> to vector<2x16xi32>
    %28 = vector.shape_cast %27 : vector<2x16xi32> to vector<1x2x16xi32>
    %cst_9 = arith.constant dense<0> : vector<1xi32>
    %29 = vector.multi_reduction <add>, %28, %cst_9 [1, 2] : vector<1x2x16xi32> to vector<1xi32>
    %30 = vector.shape_cast %29 : vector<1xi32> to vector<1x1x1xi32>
    %31 = vector.extract %30[0, 0, 0] : i32 from vector<1x1x1xi32>
    %c4_i32 = arith.constant 4 : i32
    %32 = arith.cmpi sge, %31, %c4_i32 : i32
    %33 = arith.select %32, %24, %c0_i32 : i32
    %34 = arith.select %32, %c2147483647_i32, %24 : i32
    %c1_i32_10 = arith.constant 1 : i32
    %35 = arith.subi %34, %33 : i32
    %c1_i32_11 = arith.constant 1 : i32
    %36 = arith.shrsi %35, %c1_i32_11 : i32
    %37 = arith.addi %33, %36 : i32
    %38 = vector.broadcast %37 : i32 to vector<2x16xi32>
    %39 = arith.cmpi sge, %21, %38 : vector<2x16xi32>
    %40 = arith.extui %39 : vector<2x16xi1> to vector<2x16xi32>
    %41 = vector.shape_cast %40 : vector<2x16xi32> to vector<1x2x16xi32>
    %cst_12 = arith.constant dense<0> : vector<1xi32>
    %42 = vector.multi_reduction <add>, %41, %cst_12 [1, 2] : vector<1x2x16xi32> to vector<1xi32>
    %43 = vector.shape_cast %42 : vector<1xi32> to vector<1x1x1xi32>
    %44 = vector.extract %43[0, 0, 0] : i32 from vector<1x1x1xi32>
    %c4_i32_13 = arith.constant 4 : i32
    %45 = arith.cmpi sge, %44, %c4_i32_13 : i32
    %46 = arith.select %45, %37, %33 : i32
    %47 = arith.select %45, %34, %37 : i32
    %c2_i32 = arith.constant 2 : i32
    %48 = arith.subi %47, %46 : i32
    %c1_i32_14 = arith.constant 1 : i32
    %49 = arith.shrsi %48, %c1_i32_14 : i32
    %50 = arith.addi %46, %49 : i32
    %51 = vector.broadcast %50 : i32 to vector<2x16xi32>
    %52 = arith.cmpi sge, %21, %51 : vector<2x16xi32>
    %53 = arith.extui %52 : vector<2x16xi1> to vector<2x16xi32>
    %54 = vector.shape_cast %53 : vector<2x16xi32> to vector<1x2x16xi32>
    %cst_15 = arith.constant dense<0> : vector<1xi32>
    %55 = vector.multi_reduction <add>, %54, %cst_15 [1, 2] : vector<1x2x16xi32> to vector<1xi32>
    %56 = vector.shape_cast %55 : vector<1xi32> to vector<1x1x1xi32>
    %57 = vector.extract %56[0, 0, 0] : i32 from vector<1x1x1xi32>
    %c4_i32_16 = arith.constant 4 : i32
    %58 = arith.cmpi sge, %57, %c4_i32_16 : i32
    %59 = arith.select %58, %50, %46 : i32
    %60 = arith.select %58, %47, %50 : i32
    %c3_i32 = arith.constant 3 : i32
    %61 = arith.subi %60, %59 : i32
    %c1_i32_17 = arith.constant 1 : i32
    %62 = arith.shrsi %61, %c1_i32_17 : i32
    %63 = arith.addi %59, %62 : i32
    %64 = vector.broadcast %63 : i32 to vector<2x16xi32>
    %65 = arith.cmpi sge, %21, %64 : vector<2x16xi32>
    %66 = arith.extui %65 : vector<2x16xi1> to vector<2x16xi32>
    %67 = vector.shape_cast %66 : vector<2x16xi32> to vector<1x2x16xi32>
    %cst_18 = arith.constant dense<0> : vector<1xi32>
    %68 = vector.multi_reduction <add>, %67, %cst_18 [1, 2] : vector<1x2x16xi32> to vector<1xi32>
    %69 = vector.shape_cast %68 : vector<1xi32> to vector<1x1x1xi32>
    %70 = vector.extract %69[0, 0, 0] : i32 from vector<1x1x1xi32>
    %c4_i32_19 = arith.constant 4 : i32
    %71 = arith.cmpi sge, %70, %c4_i32_19 : i32
    %72 = arith.select %71, %63, %59 : i32
    %73 = arith.select %71, %60, %63 : i32
    %c4_i32_20 = arith.constant 4 : i32
    %74 = arith.subi %73, %72 : i32
    %c1_i32_21 = arith.constant 1 : i32
    %75 = arith.shrsi %74, %c1_i32_21 : i32
    %76 = arith.addi %72, %75 : i32
    %77 = vector.broadcast %76 : i32 to vector<2x16xi32>
    %78 = arith.cmpi sge, %21, %77 : vector<2x16xi32>
    %79 = arith.extui %78 : vector<2x16xi1> to vector<2x16xi32>
    %80 = vector.shape_cast %79 : vector<2x16xi32> to vector<1x2x16xi32>
    %cst_22 = arith.constant dense<0> : vector<1xi32>
    %81 = vector.multi_reduction <add>, %80, %cst_22 [1, 2] : vector<1x2x16xi32> to vector<1xi32>
    %82 = vector.shape_cast %81 : vector<1xi32> to vector<1x1x1xi32>
    %83 = vector.extract %82[0, 0, 0] : i32 from vector<1x1x1xi32>
    %c4_i32_23 = arith.constant 4 : i32
    %84 = arith.cmpi sge, %83, %c4_i32_23 : i32
    %85 = arith.select %84, %76, %72 : i32
    %86 = arith.select %84, %73, %76 : i32
    %c5_i32 = arith.constant 5 : i32
    %87 = arith.subi %86, %85 : i32
    %c1_i32_24 = arith.constant 1 : i32
    %88 = arith.shrsi %87, %c1_i32_24 : i32
    %89 = arith.addi %85, %88 : i32
    %90 = vector.broadcast %89 : i32 to vector<2x16xi32>
    %91 = arith.cmpi sge, %21, %90 : vector<2x16xi32>
    %92 = arith.extui %91 : vector<2x16xi1> to vector<2x16xi32>
    %93 = vector.shape_cast %92 : vector<2x16xi32> to vector<1x2x16xi32>
    %cst_25 = arith.constant dense<0> : vector<1xi32>
    %94 = vector.multi_reduction <add>, %93, %cst_25 [1, 2] : vector<1x2x16xi32> to vector<1xi32>
    %95 = vector.shape_cast %94 : vector<1xi32> to vector<1x1x1xi32>
    %96 = vector.extract %95[0, 0, 0] : i32 from vector<1x1x1xi32>
    %c4_i32_26 = arith.constant 4 : i32
    %97 = arith.cmpi sge, %96, %c4_i32_26 : i32
    %98 = arith.select %97, %89, %85 : i32
    %99 = arith.select %97, %86, %89 : i32
    %c6_i32 = arith.constant 6 : i32
    %100 = arith.subi %99, %98 : i32
    %c1_i32_27 = arith.constant 1 : i32
    %101 = arith.shrsi %100, %c1_i32_27 : i32
    %102 = arith.addi %98, %101 : i32
    %103 = vector.broadcast %102 : i32 to vector<2x16xi32>
    %104 = arith.cmpi sge, %21, %103 : vector<2x16xi32>
    %105 = arith.extui %104 : vector<2x16xi1> to vector<2x16xi32>
    %106 = vector.shape_cast %105 : vector<2x16xi32> to vector<1x2x16xi32>
    %cst_28 = arith.constant dense<0> : vector<1xi32>
    %107 = vector.multi_reduction <add>, %106, %cst_28 [1, 2] : vector<1x2x16xi32> to vector<1xi32>
    %108 = vector.shape_cast %107 : vector<1xi32> to vector<1x1x1xi32>
    %109 = vector.extract %108[0, 0, 0] : i32 from vector<1x1x1xi32>
    %c4_i32_29 = arith.constant 4 : i32
    %110 = arith.cmpi sge, %109, %c4_i32_29 : i32
    %111 = arith.select %110, %102, %98 : i32
    %112 = arith.select %110, %99, %102 : i32
    %c7_i32 = arith.constant 7 : i32
    %113 = arith.subi %112, %111 : i32
    %c1_i32_30 = arith.constant 1 : i32
    %114 = arith.shrsi %113, %c1_i32_30 : i32
    %115 = arith.addi %111, %114 : i32
    %116 = vector.broadcast %115 : i32 to vector<2x16xi32>
    %117 = arith.cmpi sge, %21, %116 : vector<2x16xi32>
    %118 = arith.extui %117 : vector<2x16xi1> to vector<2x16xi32>
    %119 = vector.shape_cast %118 : vector<2x16xi32> to vector<1x2x16xi32>
    %cst_31 = arith.constant dense<0> : vector<1xi32>
    %120 = vector.multi_reduction <add>, %119, %cst_31 [1, 2] : vector<1x2x16xi32> to vector<1xi32>
    %121 = vector.shape_cast %120 : vector<1xi32> to vector<1x1x1xi32>
    %122 = vector.extract %121[0, 0, 0] : i32 from vector<1x1x1xi32>
    %c4_i32_32 = arith.constant 4 : i32
    %123 = arith.cmpi sge, %122, %c4_i32_32 : i32
    %124 = arith.select %123, %115, %111 : i32
    %125 = arith.select %123, %112, %115 : i32
    %c8_i32 = arith.constant 8 : i32
    %126 = arith.subi %125, %124 : i32
    %c1_i32_33 = arith.constant 1 : i32
    %127 = arith.shrsi %126, %c1_i32_33 : i32
    %128 = arith.addi %124, %127 : i32
    %129 = vector.broadcast %128 : i32 to vector<2x16xi32>
    %130 = arith.cmpi sge, %21, %129 : vector<2x16xi32>
    %131 = arith.extui %130 : vector<2x16xi1> to vector<2x16xi32>
    %132 = vector.shape_cast %131 : vector<2x16xi32> to vector<1x2x16xi32>
    %cst_34 = arith.constant dense<0> : vector<1xi32>
    %133 = vector.multi_reduction <add>, %132, %cst_34 [1, 2] : vector<1x2x16xi32> to vector<1xi32>
    %134 = vector.shape_cast %133 : vector<1xi32> to vector<1x1x1xi32>
    %135 = vector.extract %134[0, 0, 0] : i32 from vector<1x1x1xi32>
    %c4_i32_35 = arith.constant 4 : i32
    %136 = arith.cmpi sge, %135, %c4_i32_35 : i32
    %137 = arith.select %136, %128, %124 : i32
    %138 = arith.select %136, %125, %128 : i32
    %c9_i32 = arith.constant 9 : i32
    %139 = arith.subi %138, %137 : i32
    %c1_i32_36 = arith.constant 1 : i32
    %140 = arith.shrsi %139, %c1_i32_36 : i32
    %141 = arith.addi %137, %140 : i32
    %142 = vector.broadcast %141 : i32 to vector<2x16xi32>
    %143 = arith.cmpi sge, %21, %142 : vector<2x16xi32>
    %144 = arith.extui %143 : vector<2x16xi1> to vector<2x16xi32>
    %145 = vector.shape_cast %144 : vector<2x16xi32> to vector<1x2x16xi32>
    %cst_37 = arith.constant dense<0> : vector<1xi32>
    %146 = vector.multi_reduction <add>, %145, %cst_37 [1, 2] : vector<1x2x16xi32> to vector<1xi32>
    %147 = vector.shape_cast %146 : vector<1xi32> to vector<1x1x1xi32>
    %148 = vector.extract %147[0, 0, 0] : i32 from vector<1x1x1xi32>
    %c4_i32_38 = arith.constant 4 : i32
    %149 = arith.cmpi sge, %148, %c4_i32_38 : i32
    %150 = arith.select %149, %141, %137 : i32
    %151 = arith.select %149, %138, %141 : i32
    %c10_i32 = arith.constant 10 : i32
    %152 = arith.subi %151, %150 : i32
    %c1_i32_39 = arith.constant 1 : i32
    %153 = arith.shrsi %152, %c1_i32_39 : i32
    %154 = arith.addi %150, %153 : i32
    %155 = vector.broadcast %154 : i32 to vector<2x16xi32>
    %156 = arith.cmpi sge, %21, %155 : vector<2x16xi32>
    %157 = arith.extui %156 : vector<2x16xi1> to vector<2x16xi32>
    %158 = vector.shape_cast %157 : vector<2x16xi32> to vector<1x2x16xi32>
    %cst_40 = arith.constant dense<0> : vector<1xi32>
    %159 = vector.multi_reduction <add>, %158, %cst_40 [1, 2] : vector<1x2x16xi32> to vector<1xi32>
    %160 = vector.shape_cast %159 : vector<1xi32> to vector<1x1x1xi32>
    %161 = vector.extract %160[0, 0, 0] : i32 from vector<1x1x1xi32>
    %c4_i32_41 = arith.constant 4 : i32
    %162 = arith.cmpi sge, %161, %c4_i32_41 : i32
    %163 = arith.select %162, %154, %150 : i32
    %164 = arith.select %162, %151, %154 : i32
    %c11_i32 = arith.constant 11 : i32
    %165 = arith.subi %164, %163 : i32
    %c1_i32_42 = arith.constant 1 : i32
    %166 = arith.shrsi %165, %c1_i32_42 : i32
    %167 = arith.addi %163, %166 : i32
    %168 = vector.broadcast %167 : i32 to vector<2x16xi32>
    %169 = arith.cmpi sge, %21, %168 : vector<2x16xi32>
    %170 = arith.extui %169 : vector<2x16xi1> to vector<2x16xi32>
    %171 = vector.shape_cast %170 : vector<2x16xi32> to vector<1x2x16xi32>
    %cst_43 = arith.constant dense<0> : vector<1xi32>
    %172 = vector.multi_reduction <add>, %171, %cst_43 [1, 2] : vector<1x2x16xi32> to vector<1xi32>
    %173 = vector.shape_cast %172 : vector<1xi32> to vector<1x1x1xi32>
    %174 = vector.extract %173[0, 0, 0] : i32 from vector<1x1x1xi32>
    %c4_i32_44 = arith.constant 4 : i32
    %175 = arith.cmpi sge, %174, %c4_i32_44 : i32
    %176 = arith.select %175, %167, %163 : i32
    %177 = arith.select %175, %164, %167 : i32
    %c12_i32 = arith.constant 12 : i32
    %178 = arith.subi %177, %176 : i32
    %c1_i32_45 = arith.constant 1 : i32
    %179 = arith.shrsi %178, %c1_i32_45 : i32
    %180 = arith.addi %176, %179 : i32
    %181 = vector.broadcast %180 : i32 to vector<2x16xi32>
    %182 = arith.cmpi sge, %21, %181 : vector<2x16xi32>
    %183 = arith.extui %182 : vector<2x16xi1> to vector<2x16xi32>
    %184 = vector.shape_cast %183 : vector<2x16xi32> to vector<1x2x16xi32>
    %cst_46 = arith.constant dense<0> : vector<1xi32>
    %185 = vector.multi_reduction <add>, %184, %cst_46 [1, 2] : vector<1x2x16xi32> to vector<1xi32>
    %186 = vector.shape_cast %185 : vector<1xi32> to vector<1x1x1xi32>
    %187 = vector.extract %186[0, 0, 0] : i32 from vector<1x1x1xi32>
    %c4_i32_47 = arith.constant 4 : i32
    %188 = arith.cmpi sge, %187, %c4_i32_47 : i32
    %189 = arith.select %188, %180, %176 : i32
    %190 = arith.select %188, %177, %180 : i32
    %c13_i32 = arith.constant 13 : i32
    %191 = arith.subi %190, %189 : i32
    %c1_i32_48 = arith.constant 1 : i32
    %192 = arith.shrsi %191, %c1_i32_48 : i32
    %193 = arith.addi %189, %192 : i32
    %194 = vector.broadcast %193 : i32 to vector<2x16xi32>
    %195 = arith.cmpi sge, %21, %194 : vector<2x16xi32>
    %196 = arith.extui %195 : vector<2x16xi1> to vector<2x16xi32>
    %197 = vector.shape_cast %196 : vector<2x16xi32> to vector<1x2x16xi32>
    %cst_49 = arith.constant dense<0> : vector<1xi32>
    %198 = vector.multi_reduction <add>, %197, %cst_49 [1, 2] : vector<1x2x16xi32> to vector<1xi32>
    %199 = vector.shape_cast %198 : vector<1xi32> to vector<1x1x1xi32>
    %200 = vector.extract %199[0, 0, 0] : i32 from vector<1x1x1xi32>
    %c4_i32_50 = arith.constant 4 : i32
    %201 = arith.cmpi sge, %200, %c4_i32_50 : i32
    %202 = arith.select %201, %193, %189 : i32
    %203 = arith.select %201, %190, %193 : i32
    %c14_i32 = arith.constant 14 : i32
    %204 = arith.subi %203, %202 : i32
    %c1_i32_51 = arith.constant 1 : i32
    %205 = arith.shrsi %204, %c1_i32_51 : i32
    %206 = arith.addi %202, %205 : i32
    %207 = vector.broadcast %206 : i32 to vector<2x16xi32>
    %208 = arith.cmpi sge, %21, %207 : vector<2x16xi32>
    %209 = arith.extui %208 : vector<2x16xi1> to vector<2x16xi32>
    %210 = vector.shape_cast %209 : vector<2x16xi32> to vector<1x2x16xi32>
    %cst_52 = arith.constant dense<0> : vector<1xi32>
    %211 = vector.multi_reduction <add>, %210, %cst_52 [1, 2] : vector<1x2x16xi32> to vector<1xi32>
    %212 = vector.shape_cast %211 : vector<1xi32> to vector<1x1x1xi32>
    %213 = vector.extract %212[0, 0, 0] : i32 from vector<1x1x1xi32>
    %c4_i32_53 = arith.constant 4 : i32
    %214 = arith.cmpi sge, %213, %c4_i32_53 : i32
    %215 = arith.select %214, %206, %202 : i32
    %216 = arith.select %214, %203, %206 : i32
    %c15_i32 = arith.constant 15 : i32
    %217 = arith.subi %216, %215 : i32
    %c1_i32_54 = arith.constant 1 : i32
    %218 = arith.shrsi %217, %c1_i32_54 : i32
    %219 = arith.addi %215, %218 : i32
    %220 = vector.broadcast %219 : i32 to vector<2x16xi32>
    %221 = arith.cmpi sge, %21, %220 : vector<2x16xi32>
    %222 = arith.extui %221 : vector<2x16xi1> to vector<2x16xi32>
    %223 = vector.shape_cast %222 : vector<2x16xi32> to vector<1x2x16xi32>
    %cst_55 = arith.constant dense<0> : vector<1xi32>
    %224 = vector.multi_reduction <add>, %223, %cst_55 [1, 2] : vector<1x2x16xi32> to vector<1xi32>
    %225 = vector.shape_cast %224 : vector<1xi32> to vector<1x1x1xi32>
    %226 = vector.extract %225[0, 0, 0] : i32 from vector<1x1x1xi32>
    %c4_i32_56 = arith.constant 4 : i32
    %227 = arith.cmpi sge, %226, %c4_i32_56 : i32
    %228 = arith.select %227, %219, %215 : i32
    %229 = arith.select %227, %216, %219 : i32
    %c16_i32 = arith.constant 16 : i32
    %230 = arith.subi %229, %228 : i32
    %c1_i32_57 = arith.constant 1 : i32
    %231 = arith.shrsi %230, %c1_i32_57 : i32
    %232 = arith.addi %228, %231 : i32
    %233 = vector.broadcast %232 : i32 to vector<2x16xi32>
    %234 = arith.cmpi sge, %21, %233 : vector<2x16xi32>
    %235 = arith.extui %234 : vector<2x16xi1> to vector<2x16xi32>
    %236 = vector.shape_cast %235 : vector<2x16xi32> to vector<1x2x16xi32>
    %cst_58 = arith.constant dense<0> : vector<1xi32>
    %237 = vector.multi_reduction <add>, %236, %cst_58 [1, 2] : vector<1x2x16xi32> to vector<1xi32>
    %238 = vector.shape_cast %237 : vector<1xi32> to vector<1x1x1xi32>
    %239 = vector.extract %238[0, 0, 0] : i32 from vector<1x1x1xi32>
    %c4_i32_59 = arith.constant 4 : i32
    %240 = arith.cmpi sge, %239, %c4_i32_59 : i32
    %241 = arith.select %240, %232, %228 : i32
    %242 = arith.select %240, %229, %232 : i32
    %c17_i32 = arith.constant 17 : i32
    %243 = arith.subi %242, %241 : i32
    %c1_i32_60 = arith.constant 1 : i32
    %244 = arith.shrsi %243, %c1_i32_60 : i32
    %245 = arith.addi %241, %244 : i32
    %246 = vector.broadcast %245 : i32 to vector<2x16xi32>
    %247 = arith.cmpi sge, %21, %246 : vector<2x16xi32>
    %248 = arith.extui %247 : vector<2x16xi1> to vector<2x16xi32>
    %249 = vector.shape_cast %248 : vector<2x16xi32> to vector<1x2x16xi32>
    %cst_61 = arith.constant dense<0> : vector<1xi32>
    %250 = vector.multi_reduction <add>, %249, %cst_61 [1, 2] : vector<1x2x16xi32> to vector<1xi32>
    %251 = vector.shape_cast %250 : vector<1xi32> to vector<1x1x1xi32>
    %252 = vector.extract %251[0, 0, 0] : i32 from vector<1x1x1xi32>
    %c4_i32_62 = arith.constant 4 : i32
    %253 = arith.cmpi sge, %252, %c4_i32_62 : i32
    %254 = arith.select %253, %245, %241 : i32
    %255 = arith.select %253, %242, %245 : i32
    %c18_i32 = arith.constant 18 : i32
    %256 = arith.subi %255, %254 : i32
    %c1_i32_63 = arith.constant 1 : i32
    %257 = arith.shrsi %256, %c1_i32_63 : i32
    %258 = arith.addi %254, %257 : i32
    %259 = vector.broadcast %258 : i32 to vector<2x16xi32>
    %260 = arith.cmpi sge, %21, %259 : vector<2x16xi32>
    %261 = arith.extui %260 : vector<2x16xi1> to vector<2x16xi32>
    %262 = vector.shape_cast %261 : vector<2x16xi32> to vector<1x2x16xi32>
    %cst_64 = arith.constant dense<0> : vector<1xi32>
    %263 = vector.multi_reduction <add>, %262, %cst_64 [1, 2] : vector<1x2x16xi32> to vector<1xi32>
    %264 = vector.shape_cast %263 : vector<1xi32> to vector<1x1x1xi32>
    %265 = vector.extract %264[0, 0, 0] : i32 from vector<1x1x1xi32>
    %c4_i32_65 = arith.constant 4 : i32
    %266 = arith.cmpi sge, %265, %c4_i32_65 : i32
    %267 = arith.select %266, %258, %254 : i32
    %268 = arith.select %266, %255, %258 : i32
    %c19_i32 = arith.constant 19 : i32
    %269 = arith.subi %268, %267 : i32
    %c1_i32_66 = arith.constant 1 : i32
    %270 = arith.shrsi %269, %c1_i32_66 : i32
    %271 = arith.addi %267, %270 : i32
    %272 = vector.broadcast %271 : i32 to vector<2x16xi32>
    %273 = arith.cmpi sge, %21, %272 : vector<2x16xi32>
    %274 = arith.extui %273 : vector<2x16xi1> to vector<2x16xi32>
    %275 = vector.shape_cast %274 : vector<2x16xi32> to vector<1x2x16xi32>
    %cst_67 = arith.constant dense<0> : vector<1xi32>
    %276 = vector.multi_reduction <add>, %275, %cst_67 [1, 2] : vector<1x2x16xi32> to vector<1xi32>
    %277 = vector.shape_cast %276 : vector<1xi32> to vector<1x1x1xi32>
    %278 = vector.extract %277[0, 0, 0] : i32 from vector<1x1x1xi32>
    %c4_i32_68 = arith.constant 4 : i32
    %279 = arith.cmpi sge, %278, %c4_i32_68 : i32
    %280 = arith.select %279, %271, %267 : i32
    %281 = arith.select %279, %268, %271 : i32
    %c20_i32 = arith.constant 20 : i32
    %282 = arith.subi %281, %280 : i32
    %c1_i32_69 = arith.constant 1 : i32
    %283 = arith.shrsi %282, %c1_i32_69 : i32
    %284 = arith.addi %280, %283 : i32
    %285 = vector.broadcast %284 : i32 to vector<2x16xi32>
    %286 = arith.cmpi sge, %21, %285 : vector<2x16xi32>
    %287 = arith.extui %286 : vector<2x16xi1> to vector<2x16xi32>
    %288 = vector.shape_cast %287 : vector<2x16xi32> to vector<1x2x16xi32>
    %cst_70 = arith.constant dense<0> : vector<1xi32>
    %289 = vector.multi_reduction <add>, %288, %cst_70 [1, 2] : vector<1x2x16xi32> to vector<1xi32>
    %290 = vector.shape_cast %289 : vector<1xi32> to vector<1x1x1xi32>
    %291 = vector.extract %290[0, 0, 0] : i32 from vector<1x1x1xi32>
    %c4_i32_71 = arith.constant 4 : i32
    %292 = arith.cmpi sge, %291, %c4_i32_71 : i32
    %293 = arith.select %292, %284, %280 : i32
    %294 = arith.select %292, %281, %284 : i32
    %c21_i32 = arith.constant 21 : i32
    %295 = arith.subi %294, %293 : i32
    %c1_i32_72 = arith.constant 1 : i32
    %296 = arith.shrsi %295, %c1_i32_72 : i32
    %297 = arith.addi %293, %296 : i32
    %298 = vector.broadcast %297 : i32 to vector<2x16xi32>
    %299 = arith.cmpi sge, %21, %298 : vector<2x16xi32>
    %300 = arith.extui %299 : vector<2x16xi1> to vector<2x16xi32>
    %301 = vector.shape_cast %300 : vector<2x16xi32> to vector<1x2x16xi32>
    %cst_73 = arith.constant dense<0> : vector<1xi32>
    %302 = vector.multi_reduction <add>, %301, %cst_73 [1, 2] : vector<1x2x16xi32> to vector<1xi32>
    %303 = vector.shape_cast %302 : vector<1xi32> to vector<1x1x1xi32>
    %304 = vector.extract %303[0, 0, 0] : i32 from vector<1x1x1xi32>
    %c4_i32_74 = arith.constant 4 : i32
    %305 = arith.cmpi sge, %304, %c4_i32_74 : i32
    %306 = arith.select %305, %297, %293 : i32
    %307 = arith.select %305, %294, %297 : i32
    %c22_i32 = arith.constant 22 : i32
    %308 = arith.subi %307, %306 : i32
    %c1_i32_75 = arith.constant 1 : i32
    %309 = arith.shrsi %308, %c1_i32_75 : i32
    %310 = arith.addi %306, %309 : i32
    %311 = vector.broadcast %310 : i32 to vector<2x16xi32>
    %312 = arith.cmpi sge, %21, %311 : vector<2x16xi32>
    %313 = arith.extui %312 : vector<2x16xi1> to vector<2x16xi32>
    %314 = vector.shape_cast %313 : vector<2x16xi32> to vector<1x2x16xi32>
    %cst_76 = arith.constant dense<0> : vector<1xi32>
    %315 = vector.multi_reduction <add>, %314, %cst_76 [1, 2] : vector<1x2x16xi32> to vector<1xi32>
    %316 = vector.shape_cast %315 : vector<1xi32> to vector<1x1x1xi32>
    %317 = vector.extract %316[0, 0, 0] : i32 from vector<1x1x1xi32>
    %c4_i32_77 = arith.constant 4 : i32
    %318 = arith.cmpi sge, %317, %c4_i32_77 : i32
    %319 = arith.select %318, %310, %306 : i32
    %320 = arith.select %318, %307, %310 : i32
    %c23_i32 = arith.constant 23 : i32
    %321 = arith.subi %320, %319 : i32
    %c1_i32_78 = arith.constant 1 : i32
    %322 = arith.shrsi %321, %c1_i32_78 : i32
    %323 = arith.addi %319, %322 : i32
    %324 = vector.broadcast %323 : i32 to vector<2x16xi32>
    %325 = arith.cmpi sge, %21, %324 : vector<2x16xi32>
    %326 = arith.extui %325 : vector<2x16xi1> to vector<2x16xi32>
    %327 = vector.shape_cast %326 : vector<2x16xi32> to vector<1x2x16xi32>
    %cst_79 = arith.constant dense<0> : vector<1xi32>
    %328 = vector.multi_reduction <add>, %327, %cst_79 [1, 2] : vector<1x2x16xi32> to vector<1xi32>
    %329 = vector.shape_cast %328 : vector<1xi32> to vector<1x1x1xi32>
    %330 = vector.extract %329[0, 0, 0] : i32 from vector<1x1x1xi32>
    %c4_i32_80 = arith.constant 4 : i32
    %331 = arith.cmpi sge, %330, %c4_i32_80 : i32
    %332 = arith.select %331, %323, %319 : i32
    %333 = arith.select %331, %320, %323 : i32
    %c24_i32 = arith.constant 24 : i32
    %334 = arith.subi %333, %332 : i32
    %c1_i32_81 = arith.constant 1 : i32
    %335 = arith.shrsi %334, %c1_i32_81 : i32
    %336 = arith.addi %332, %335 : i32
    %337 = vector.broadcast %336 : i32 to vector<2x16xi32>
    %338 = arith.cmpi sge, %21, %337 : vector<2x16xi32>
    %339 = arith.extui %338 : vector<2x16xi1> to vector<2x16xi32>
    %340 = vector.shape_cast %339 : vector<2x16xi32> to vector<1x2x16xi32>
    %cst_82 = arith.constant dense<0> : vector<1xi32>
    %341 = vector.multi_reduction <add>, %340, %cst_82 [1, 2] : vector<1x2x16xi32> to vector<1xi32>
    %342 = vector.shape_cast %341 : vector<1xi32> to vector<1x1x1xi32>
    %343 = vector.extract %342[0, 0, 0] : i32 from vector<1x1x1xi32>
    %c4_i32_83 = arith.constant 4 : i32
    %344 = arith.cmpi sge, %343, %c4_i32_83 : i32
    %345 = arith.select %344, %336, %332 : i32
    %346 = arith.select %344, %333, %336 : i32
    %c25_i32 = arith.constant 25 : i32
    %347 = arith.subi %346, %345 : i32
    %c1_i32_84 = arith.constant 1 : i32
    %348 = arith.shrsi %347, %c1_i32_84 : i32
    %349 = arith.addi %345, %348 : i32
    %350 = vector.broadcast %349 : i32 to vector<2x16xi32>
    %351 = arith.cmpi sge, %21, %350 : vector<2x16xi32>
    %352 = arith.extui %351 : vector<2x16xi1> to vector<2x16xi32>
    %353 = vector.shape_cast %352 : vector<2x16xi32> to vector<1x2x16xi32>
    %cst_85 = arith.constant dense<0> : vector<1xi32>
    %354 = vector.multi_reduction <add>, %353, %cst_85 [1, 2] : vector<1x2x16xi32> to vector<1xi32>
    %355 = vector.shape_cast %354 : vector<1xi32> to vector<1x1x1xi32>
    %356 = vector.extract %355[0, 0, 0] : i32 from vector<1x1x1xi32>
    %c4_i32_86 = arith.constant 4 : i32
    %357 = arith.cmpi sge, %356, %c4_i32_86 : i32
    %358 = arith.select %357, %349, %345 : i32
    %359 = arith.select %357, %346, %349 : i32
    %c26_i32 = arith.constant 26 : i32
    %360 = arith.subi %359, %358 : i32
    %c1_i32_87 = arith.constant 1 : i32
    %361 = arith.shrsi %360, %c1_i32_87 : i32
    %362 = arith.addi %358, %361 : i32
    %363 = vector.broadcast %362 : i32 to vector<2x16xi32>
    %364 = arith.cmpi sge, %21, %363 : vector<2x16xi32>
    %365 = arith.extui %364 : vector<2x16xi1> to vector<2x16xi32>
    %366 = vector.shape_cast %365 : vector<2x16xi32> to vector<1x2x16xi32>
    %cst_88 = arith.constant dense<0> : vector<1xi32>
    %367 = vector.multi_reduction <add>, %366, %cst_88 [1, 2] : vector<1x2x16xi32> to vector<1xi32>
    %368 = vector.shape_cast %367 : vector<1xi32> to vector<1x1x1xi32>
    %369 = vector.extract %368[0, 0, 0] : i32 from vector<1x1x1xi32>
    %c4_i32_89 = arith.constant 4 : i32
    %370 = arith.cmpi sge, %369, %c4_i32_89 : i32
    %371 = arith.select %370, %362, %358 : i32
    %372 = arith.select %370, %359, %362 : i32
    %c27_i32 = arith.constant 27 : i32
    %373 = arith.subi %372, %371 : i32
    %c1_i32_90 = arith.constant 1 : i32
    %374 = arith.shrsi %373, %c1_i32_90 : i32
    %375 = arith.addi %371, %374 : i32
    %376 = vector.broadcast %375 : i32 to vector<2x16xi32>
    %377 = arith.cmpi sge, %21, %376 : vector<2x16xi32>
    %378 = arith.extui %377 : vector<2x16xi1> to vector<2x16xi32>
    %379 = vector.shape_cast %378 : vector<2x16xi32> to vector<1x2x16xi32>
    %cst_91 = arith.constant dense<0> : vector<1xi32>
    %380 = vector.multi_reduction <add>, %379, %cst_91 [1, 2] : vector<1x2x16xi32> to vector<1xi32>
    %381 = vector.shape_cast %380 : vector<1xi32> to vector<1x1x1xi32>
    %382 = vector.extract %381[0, 0, 0] : i32 from vector<1x1x1xi32>
    %c4_i32_92 = arith.constant 4 : i32
    %383 = arith.cmpi sge, %382, %c4_i32_92 : i32
    %384 = arith.select %383, %375, %371 : i32
    %385 = arith.select %383, %372, %375 : i32
    %c28_i32 = arith.constant 28 : i32
    %386 = arith.subi %385, %384 : i32
    %c1_i32_93 = arith.constant 1 : i32
    %387 = arith.shrsi %386, %c1_i32_93 : i32
    %388 = arith.addi %384, %387 : i32
    %389 = vector.broadcast %388 : i32 to vector<2x16xi32>
    %390 = arith.cmpi sge, %21, %389 : vector<2x16xi32>
    %391 = arith.extui %390 : vector<2x16xi1> to vector<2x16xi32>
    %392 = vector.shape_cast %391 : vector<2x16xi32> to vector<1x2x16xi32>
    %cst_94 = arith.constant dense<0> : vector<1xi32>
    %393 = vector.multi_reduction <add>, %392, %cst_94 [1, 2] : vector<1x2x16xi32> to vector<1xi32>
    %394 = vector.shape_cast %393 : vector<1xi32> to vector<1x1x1xi32>
    %395 = vector.extract %394[0, 0, 0] : i32 from vector<1x1x1xi32>
    %c4_i32_95 = arith.constant 4 : i32
    %396 = arith.cmpi sge, %395, %c4_i32_95 : i32
    %397 = arith.select %396, %388, %384 : i32
    %398 = arith.select %396, %385, %388 : i32
    %c29_i32 = arith.constant 29 : i32
    %399 = arith.subi %398, %397 : i32
    %c1_i32_96 = arith.constant 1 : i32
    %400 = arith.shrsi %399, %c1_i32_96 : i32
    %401 = arith.addi %397, %400 : i32
    %402 = vector.broadcast %401 : i32 to vector<2x16xi32>
    %403 = arith.cmpi sge, %21, %402 : vector<2x16xi32>
    %404 = arith.extui %403 : vector<2x16xi1> to vector<2x16xi32>
    %405 = vector.shape_cast %404 : vector<2x16xi32> to vector<1x2x16xi32>
    %cst_97 = arith.constant dense<0> : vector<1xi32>
    %406 = vector.multi_reduction <add>, %405, %cst_97 [1, 2] : vector<1x2x16xi32> to vector<1xi32>
    %407 = vector.shape_cast %406 : vector<1xi32> to vector<1x1x1xi32>
    %408 = vector.extract %407[0, 0, 0] : i32 from vector<1x1x1xi32>
    %c4_i32_98 = arith.constant 4 : i32
    %409 = arith.cmpi sge, %408, %c4_i32_98 : i32
    %410 = arith.select %409, %401, %397 : i32
    %411 = arith.select %409, %398, %401 : i32
    %c30_i32 = arith.constant 30 : i32
    %412 = arith.subi %411, %410 : i32
    %c1_i32_99 = arith.constant 1 : i32
    %413 = arith.shrsi %412, %c1_i32_99 : i32
    %414 = arith.addi %410, %413 : i32
    %415 = vector.broadcast %414 : i32 to vector<2x16xi32>
    %416 = arith.cmpi sge, %21, %415 : vector<2x16xi32>
    %417 = arith.extui %416 : vector<2x16xi1> to vector<2x16xi32>
    %418 = vector.shape_cast %417 : vector<2x16xi32> to vector<1x2x16xi32>
    %cst_100 = arith.constant dense<0> : vector<1xi32>
    %419 = vector.multi_reduction <add>, %418, %cst_100 [1, 2] : vector<1x2x16xi32> to vector<1xi32>
    %420 = vector.shape_cast %419 : vector<1xi32> to vector<1x1x1xi32>
    %421 = vector.extract %420[0, 0, 0] : i32 from vector<1x1x1xi32>
    %c4_i32_101 = arith.constant 4 : i32
    %422 = arith.cmpi sge, %421, %c4_i32_101 : i32
    %423 = arith.select %422, %414, %410 : i32
    %424 = arith.select %422, %411, %414 : i32
    %425 = vector.broadcast %423 : i32 to vector<2x16xi32>
    %426 = arith.cmpi slt, %21, %425 : vector<2x16xi32>
    %cst_102 = arith.constant 0.000000e+00 : f32
    %427 = vector.broadcast %cst_102 : f32 to vector<2x16xf32>
    %428 = arith.select %426, %20, %427 : vector<2x16xi1>, vector<2x16xf32>
    %429 = arith.addf %16, %428 : vector<2x16xf32>
    %c0_103 = arith.constant 0 : index
    %c0_104 = arith.constant 0 : index
    %430 = vector.load %arg2[%c0_103, %c0_104] : memref<2x16xf32, #tpu.memory_space<vmem>>, vector<2x16xf32>
    tpu.vector_store %arg2[%c0_103, %c0_104], %429 {strides = array<i32>} : memref<2x16xf32, #tpu.memory_space<vmem>>, vector<2x16xf32>,
    return
  }
}

</mosaic_0001>

<llo_original>
// kernel: tpu_custom_call.1
$region0: #{tpu_custom_call.1}
  #allocation0 [shape = 'u32[]', space=smem, size = 0x4, offset = 0x4, fixed_abs, tag = 'smem constant byte address 0x4 - core index']
  #allocation1 [shape = 'u32[144,128]{1,0:T(1,128)}', space=vmem, size = 0x12000, scoped, tag = 'internal scratch']
  %s0 = inlined_call_operand.hbm [shape: f32[2,16], index: 0, kind: input, shape index: {}]
  %s1 = inlined_call_operand.hbm [shape: f32[2,16], index: 1, kind: input, shape index: {}]
  %s2 = inlined_call_operand.hbm [shape: f32[2,16], index: 2, kind: output, shape index: {}]
  %s3 = sld [smem:[#allocation0]]
  $region26: #{tpu_custom_call.1} parent=0
    _
  %s5 = ssub.s32 1, %s3
  %s6 = scalar_select 0, %s5, %s3
  $region1: #{tpu_custom_call.1} parent=0
    #allocation2 [shape = 'u8[1024]{0}', space=vmem, size = 0x400, scoped, tag = 'input window, operand 0, single buffered']
    #allocation3 [shape = 's32[1]{0}', space=sflag, size = 0x4, scoped, tag = 'scoped memory for tpu_custom_call.1']
    #allocation4 [shape = 's32[1]{0}', space=sflag, size = 0x4, scoped, tag = 'scoped memory for tpu_custom_call.1']
    #allocation5 [shape = 'u8[1024]{0}', space=vmem, size = 0x400, scoped, tag = 'input window, operand 1, single buffered']
    #allocation6 [shape = 's32[1]{0}', space=sflag, size = 0x4, scoped, tag = 'scoped memory for tpu_custom_call.1']
    #allocation7 [shape = 'u8[1024]{0}', space=vmem, size = 0x400, scoped, tag = 'output window, operand 0, single buffered']
    %7 = vsyncpa [#allocation3], 0
    %8 = vsyncpa [#allocation6], 0
    %9 = vsyncpa [#allocation4], 0
    // Predicated region
    $region2: #{tpu_custom_call.1} parent=1 // pred_check
      _
    $region3: #{tpu_custom_call.1} parent=1 // pred_check_branch
      %11 = sbr.rel (0) target = $region5
    $region4: #{tpu_custom_call.1} parent=1 // pred_region
      %s13 = ssub.s32 32, 32
      %14 = vsyncadd [#allocation3], %s13
      %s16 = sshll.u32 [#allocation2], 4
      %s17 = int_to_ptr.vmem [resolvable:$true] %s16
      %19 = dma.hbm_to_vmem [thread:$0]  %s0, 32, %s17, [#allocation3]
    $region5: #{tpu_custom_call.1} parent=1 // pred_fallthru
      _
    // Predicated region
    $region6: #{tpu_custom_call.1} parent=1 // pred_check
      _
    $region7: #{tpu_custom_call.1} parent=1 // pred_check_branch
      %21 = sbr.rel (0) target = $region9
    $region8: #{tpu_custom_call.1} parent=1 // pred_region
      %s23 = ssub.s32 32, 32
      %24 = vsyncadd [#allocation6], %s23
      %s26 = sshll.u32 [#allocation5], 4
      %s27 = int_to_ptr.vmem [resolvable:$true] %s26
      %29 = dma.hbm_to_vmem [thread:$0]  %s1, 32, %s27, [#allocation6]
    $region9: #{tpu_custom_call.1} parent=1 // pred_fallthru
      _
    // Predicated region
    $region10: #{tpu_custom_call.1} parent=1 // pred_check
      _
    $region11: #{tpu_custom_call.1} parent=1 // pred_check_branch
      %31 = sbr.rel (0) target = $region13
    $region12: #{tpu_custom_call.1} parent=1 // pred_region
      %32 = dma.done [#allocation3], 32
    $region13: #{tpu_custom_call.1} parent=1 // pred_fallthru
      _
    // Predicated region
    $region14: #{tpu_custom_call.1} parent=1 // pred_check
      _
    $region15: #{tpu_custom_call.1} parent=1 // pred_check_branch
      %34 = sbr.rel (0) target = $region17
    $region16: #{tpu_custom_call.1} parent=1 // pred_region
      %35 = dma.done [#allocation6], 32
    $region17: #{tpu_custom_call.1} parent=1 // pred_fallthru
      _
    %v36 = vld [vmem:[#allocation2] sm:$0x3]
    %v37 = vld [vmem:[#allocation5] sm:$0x3]
    %v38 = vand.u32 2147483647, %v36
    %v39 = vsub.f32 0.0, %v38
    %v40 = vmul.f32 %v39, 1.442695
    %v41 = vpow.pop %v40
    %v42 = vadd.f32 %v41, 1.0
    %v43 = vlog2.pop %v42
    %v44 = vmul.f32 %v43, 0.6931472
    %v45 = vmul.f32 -0.5, %v41
    %v46 = vadd.f32 %v45, 1.0
    %v47 = vmul.f32 %v46, %v41
    %v48 = vand.u32 2147483647, %v41
    %vm49 = vcmp.lt.f32.partialorder %v48, 0.0004427343
    %v50 = vsel %vm49, %v47, %v44
    %v51 = vmax.f32 %v36, 0.0
    %v52 = vmul.f32 %v36, %v37
    %v53 = vsub.f32 %v51, %v52
    %v54 = vadd.f32 %v53, %v50
    %v55 = vsub.f32 %v54, %v36
    %vm56 = vcmp.gt.f32.partialorder %v37, 0.0
    %v57 = vsel %vm56, %v54, 0.0
    %vm58 = vcmp.lt.f32.partialorder %v37, -0.0
    %v59 = vsel %vm58, %v55, 0.0
    %vm61 = vcmp.ge.s32.totalorder %v59, 1073741823
    %v62 = vsel %vm61, 1, 0
    %vm63 = vcmask 123904
    %v64 = vsel %vm63, %v62, 0
    %v65 = vand.u32 %v64, 65535
    %v66 = vshrl.u32 %v64, 16
    %v67 = vcvt.s32.f32 %v65
    %v68 = vcvt.s32.f32 %v66
    %69 = vadd.xlane.f32.xlu0 %v67
    %v70 = vpop.xlane.xlu0 %69
    %71 = vadd.xlane.f32.xlu0 %v68
    %v72 = vpop.xlane.xlu0 %71
    %v73 = vcvt.f32.s32 %v70
    %v74 = vcvt.f32.s32 %v72
    %v75 = vshll.u32 %v74, 16
    %v76 = vadd.s32 %v75, %v73
    %v77 = vrot.slane %v76, 4
    %v78 = vadd.s32 %v76, %v77
    %v79 = vrot.slane %v78, 2
    %v80 = vadd.s32 %v78, %v79
    %v81 = vrot.slane %v80, 1
    %v82 = vadd.s32 %v80, %v81
    %s83 = vtos %v82
    %p84 = scmp.ge.s32.totalorder %s83, 4
    %s85 = scalar_select %p84, 1073741823, 0
    %s86 = scalar_select %p84, 2147483647, 1073741823
    %s87 = ssub.s32 %s86, %s85
    %s88 = sshra.s32 %s87, 1
    %s89 = sadd.s32 %s85, %s88
    %v90 = vstv %s89
    %vm91 = vcmp.ge.s32.totalorder %v59, %v90
    %v92 = vsel %vm91, 1, 0
    %v93 = vsel %vm63, %v92, 0
    %v94 = vand.u32 %v93, 65535
    %v95 = vshrl.u32 %v93, 16
    %v96 = vcvt.s32.f32 %v94
    %v97 = vcvt.s32.f32 %v95
    %98 = vadd.xlane.f32.xlu0 %v96
    %v99 = vpop.xlane.xlu0 %98
    %100 = vadd.xlane.f32.xlu0 %v97
    %v101 = vpop.xlane.xlu0 %100
    %v102 = vcvt.f32.s32 %v99
    %v103 = vcvt.f32.s32 %v101
    %v104 = vshll.u32 %v103, 16
    %v105 = vadd.s32 %v104, %v102
    %v106 = vrot.slane %v105, 4
    %v107 = vadd.s32 %v105, %v106
    %v108 = vrot.slane %v107, 2
    %v109 = vadd.s32 %v107, %v108
    %v110 = vrot.slane %v109, 1
    %v111 = vadd.s32 %v109, %v110
    %s112 = vtos %v111
    %p113 = scmp.ge.s32.totalorder %s112, 4
    %s114 = scalar_select %p113, %s89, %s85
    %s115 = scalar_select %p113, %s86, %s89
    %s116 = ssub.s32 %s115, %s114
    %s117 = sshra.s32 %s116, 1
    %s118 = sadd.s32 %s114, %s117
    %v119 = vstv %s118
    %vm120 = vcmp.ge.s32.totalorder %v59, %v119
    %v121 = vsel %vm120, 1, 0
    %v122 = vsel %vm63, %v121, 0
    %v123 = vand.u32 %v122, 65535
    %v124 = vshrl.u32 %v122, 16
    %v125 = vcvt.s32.f32 %v123
    %v126 = vcvt.s32.f32 %v124
    %127 = vadd.xlane.f32.xlu0 %v125
    %v128 = vpop.xlane.xlu0 %127
    %129 = vadd.xlane.f32.xlu0 %v126
    %v130 = vpop.xlane.xlu0 %129
    %v131 = vcvt.f32.s32 %v128
    %v132 = vcvt.f32.s32 %v130
    %v133 = vshll.u32 %v132, 16
    %v134 = vadd.s32 %v133, %v131
    %v135 = vrot.slane %v134, 4
    %v136 = vadd.s32 %v134, %v135
    %v137 = vrot.slane %v136, 2
    %v138 = vadd.s32 %v136, %v137
    %v139 = vrot.slane %v138, 1
    %v140 = vadd.s32 %v138, %v139
    %s141 = vtos %v140
    %p142 = scmp.ge.s32.totalorder %s141, 4
    %s143 = scalar_select %p142, %s118, %s114
    %s144 = scalar_select %p142, %s115, %s118
    %s145 = ssub.s32 %s144, %s143
    %s146 = sshra.s32 %s145, 1
    %s147 = sadd.s32 %s143, %s146
    %v148 = vstv %s147
    %vm149 = vcmp.ge.s32.totalorder %v59, %v148
    %v150 = vsel %vm149, 1, 0
    %v151 = vsel %vm63, %v150, 0
    %v152 = vand.u32 %v151, 65535
    %v153 = vshrl.u32 %v151, 16
    %v154 = vcvt.s32.f32 %v152
    %v155 = vcvt.s32.f32 %v153
    %156 = vadd.xlane.f32.xlu0 %v154
    %v157 = vpop.xlane.xlu0 %156
    %158 = vadd.xlane.f32.xlu0 %v155
    %v159 = vpop.xlane.xlu0 %158
    %v160 = vcvt.f32.s32 %v157
    %v161 = vcvt.f32.s32 %v159
    %v162 = vshll.u32 %v161, 16
    %v163 = vadd.s32 %v162, %v160
    %v164 = vrot.slane %v163, 4
    %v165 = vadd.s32 %v163, %v164
    %v166 = vrot.slane %v165, 2
    %v167 = vadd.s32 %v165, %v166
    %v168 = vrot.slane %v167, 1
    %v169 = vadd.s32 %v167, %v168
    %s170 = vtos %v169
    %p171 = scmp.ge.s32.totalorder %s170, 4
    %s172 = scalar_select %p171, %s147, %s143
    %s173 = scalar_select %p171, %s144, %s147
    %s174 = ssub.s32 %s173, %s172
    %s175 = sshra.s32 %s174, 1
    %s176 = sadd.s32 %s172, %s175
    %v177 = vstv %s176
    %vm178 = vcmp.ge.s32.totalorder %v59, %v177
    %v179 = vsel %vm178, 1, 0
    %v180 = vsel %vm63, %v179, 0
    %v181 = vand.u32 %v180, 65535
    %v182 = vshrl.u32 %v180, 16
    %v183 = vcvt.s32.f32 %v181
    %v184 = vcvt.s32.f32 %v182
    %185 = vadd.xlane.f32.xlu0 %v183
    %v186 = vpop.xlane.xlu0 %185
    %187 = vadd.xlane.f32.xlu0 %v184
    %v188 = vpop.xlane.xlu0 %187
    %v189 = vcvt.f32.s32 %v186
    %v190 = vcvt.f32.s32 %v188
    %v191 = vshll.u32 %v190, 16
    %v192 = vadd.s32 %v191, %v189
    %v193 = vrot.slane %v192, 4
    %v194 = vadd.s32 %v192, %v193
    %v195 = vrot.slane %v194, 2
    %v196 = vadd.s32 %v194, %v195
    %v197 = vrot.slane %v196, 1
    %v198 = vadd.s32 %v196, %v197
    %s199 = vtos %v198
    %p200 = scmp.ge.s32.totalorder %s199, 4
    %s201 = scalar_select %p200, %s176, %s172
    %s202 = scalar_select %p200, %s173, %s176
    %s203 = ssub.s32 %s202, %s201
    %s204 = sshra.s32 %s203, 1
    %s205 = sadd.s32 %s201, %s204
    %v206 = vstv %s205
    %vm207 = vcmp.ge.s32.totalorder %v59, %v206
    %v208 = vsel %vm207, 1, 0
    %v209 = vsel %vm63, %v208, 0
    %v210 = vand.u32 %v209, 65535
    %v211 = vshrl.u32 %v209, 16
    %v212 = vcvt.s32.f32 %v210
    %v213 = vcvt.s32.f32 %v211
    %214 = vadd.xlane.f32.xlu0 %v212
    %v215 = vpop.xlane.xlu0 %214
    %216 = vadd.xlane.f32.xlu0 %v213
    %v217 = vpop.xlane.xlu0 %216
    %v218 = vcvt.f32.s32 %v215
    %v219 = vcvt.f32.s32 %v217
    %v220 = vshll.u32 %v219, 16
    %v221 = vadd.s32 %v220, %v218
    %v222 = vrot.slane %v221, 4
    %v223 = vadd.s32 %v221, %v222
    %v224 = vrot.slane %v223, 2
    %v225 = vadd.s32 %v223, %v224
    %v226 = vrot.slane %v225, 1
    %v227 = vadd.s32 %v225, %v226
    %s228 = vtos %v227
    %p229 = scmp.ge.s32.totalorder %s228, 4
    %s230 = scalar_select %p229, %s205, %s201
    %s231 = scalar_select %p229, %s202, %s205
    %s232 = ssub.s32 %s231, %s230
    %s233 = sshra.s32 %s232, 1
    %s234 = sadd.s32 %s230, %s233
    %v235 = vstv %s234
    %vm236 = vcmp.ge.s32.totalorder %v59, %v235
    %v237 = vsel %vm236, 1, 0
    %v238 = vsel %vm63, %v237, 0
    %v239 = vand.u32 %v238, 65535
    %v240 = vshrl.u32 %v238, 16
    %v241 = vcvt.s32.f32 %v239
    %v242 = vcvt.s32.f32 %v240
    %243 = vadd.xlane.f32.xlu0 %v241
    %v244 = vpop.xlane.xlu0 %243
    %245 = vadd.xlane.f32.xlu0 %v242
    %v246 = vpop.xlane.xlu0 %245
    %v247 = vcvt.f32.s32 %v244
    %v248 = vcvt.f32.s32 %v246
    %v249 = vshll.u32 %v248, 16
    %v250 = vadd.s32 %v249, %v247
    %v251 = vrot.slane %v250, 4
    %v252 = vadd.s32 %v250, %v251
    %v253 = vrot.slane %v252, 2
    %v254 = vadd.s32 %v252, %v253
    %v255 = vrot.slane %v254, 1
    %v256 = vadd.s32 %v254, %v255
    %s257 = vtos %v256
    %p258 = scmp.ge.s32.totalorder %s257, 4
    %s259 = scalar_select %p258, %s234, %s230
    %s260 = scalar_select %p258, %s231, %s234
    %s261 = ssub.s32 %s260, %s259
    %s262 = sshra.s32 %s261, 1
    %s263 = sadd.s32 %s259, %s262
    %v264 = vstv %s263
    %vm265 = vcmp.ge.s32.totalorder %v59, %v264
    %v266 = vsel %vm265, 1, 0
    %v267 = vsel %vm63, %v266, 0
    %v268 = vand.u32 %v267, 65535
    %v269 = vshrl.u32 %v267, 16
    %v270 = vcvt.s32.f32 %v268
    %v271 = vcvt.s32.f32 %v269
    %272 = vadd.xlane.f32.xlu0 %v270
    %v273 = vpop.xlane.xlu0 %272
    %274 = vadd.xlane.f32.xlu0 %v271
    %v275 = vpop.xlane.xlu0 %274
    %v276 = vcvt.f32.s32 %v273
    %v277 = vcvt.f32.s32 %v275
    %v278 = vshll.u32 %v277, 16
    %v279 = vadd.s32 %v278, %v276
    %v280 = vrot.slane %v279, 4
    %v281 = vadd.s32 %v279, %v280
    %v282 = vrot.slane %v281, 2
    %v283 = vadd.s32 %v281, %v282
    %v284 = vrot.slane %v283, 1
    %v285 = vadd.s32 %v283, %v284
    %s286 = vtos %v285
    %p287 = scmp.ge.s32.totalorder %s286, 4
    %s288 = scalar_select %p287, %s263, %s259
    %s289 = scalar_select %p287, %s260, %s263
    %s290 = ssub.s32 %s289, %s288
    %s291 = sshra.s32 %s290, 1
    %s292 = sadd.s32 %s288, %s291
    %v293 = vstv %s292
    %vm294 = vcmp.ge.s32.totalorder %v59, %v293
    %v295 = vsel %vm294, 1, 0
    %v296 = vsel %vm63, %v295, 0
    %v297 = vand.u32 %v296, 65535
    %v298 = vshrl.u32 %v296, 16
    %v299 = vcvt.s32.f32 %v297
    %v300 = vcvt.s32.f32 %v298
    %301 = vadd.xlane.f32.xlu0 %v299
    %v302 = vpop.xlane.xlu0 %301
    %303 = vadd.xlane.f32.xlu0 %v300
    %v304 = vpop.xlane.xlu0 %303
    %v305 = vcvt.f32.s32 %v302
    %v306 = vcvt.f32.s32 %v304
    %v307 = vshll.u32 %v306, 16
    %v308 = vadd.s32 %v307, %v305
    %v309 = vrot.slane %v308, 4
    %v310 = vadd.s32 %v308, %v309
    %v311 = vrot.slane %v310, 2
    %v312 = vadd.s32 %v310, %v311
    %v313 = vrot.slane %v312, 1
    %v314 = vadd.s32 %v312, %v313
    %s315 = vtos %v314
    %p316 = scmp.ge.s32.totalorder %s315, 4
    %s317 = scalar_select %p316, %s292, %s288
    %s318 = scalar_select %p316, %s289, %s292
    %s319 = ssub.s32 %s318, %s317
    %s320 = sshra.s32 %s319, 1
    %s321 = sadd.s32 %s317, %s320
    %v322 = vstv %s321
    %vm323 = vcmp.ge.s32.totalorder %v59, %v322
    %v324 = vsel %vm323, 1, 0
    %v325 = vsel %vm63, %v324, 0
    %v326 = vand.u32 %v325, 65535
    %v327 = vshrl.u32 %v325, 16
    %v328 = vcvt.s32.f32 %v326
    %v329 = vcvt.s32.f32 %v327
    %330 = vadd.xlane.f32.xlu0 %v328
    %v331 = vpop.xlane.xlu0 %330
    %332 = vadd.xlane.f32.xlu0 %v329
    %v333 = vpop.xlane.xlu0 %332
    %v334 = vcvt.f32.s32 %v331
    %v335 = vcvt.f32.s32 %v333
    %v336 = vshll.u32 %v335, 16
    %v337 = vadd.s32 %v336, %v334
    %v338 = vrot.slane %v337, 4
    %v339 = vadd.s32 %v337, %v338
    %v340 = vrot.slane %v339, 2
    %v341 = vadd.s32 %v339, %v340
    %v342 = vrot.slane %v341, 1
    %v343 = vadd.s32 %v341, %v342
    %s344 = vtos %v343
    %p345 = scmp.ge.s32.totalorder %s344, 4
    %s346 = scalar_select %p345, %s321, %s317
    %s347 = scalar_select %p345, %s318, %s321
    %s348 = ssub.s32 %s347, %s346
    %s349 = sshra.s32 %s348, 1
    %s350 = sadd.s32 %s346, %s349
    %v351 = vstv %s350
    %vm352 = vcmp.ge.s32.totalorder %v59, %v351
    %v353 = vsel %vm352, 1, 0
    %v354 = vsel %vm63, %v353, 0
    %v355 = vand.u32 %v354, 65535
    %v356 = vshrl.u32 %v354, 16
    %v357 = vcvt.s32.f32 %v355
    %v358 = vcvt.s32.f32 %v356
    %359 = vadd.xlane.f32.xlu0 %v357
    %v360 = vpop.xlane.xlu0 %359
    %361 = vadd.xlane.f32.xlu0 %v358
    %v362 = vpop.xlane.xlu0 %361
    %v363 = vcvt.f32.s32 %v360
    %v364 = vcvt.f32.s32 %v362
    %v365 = vshll.u32 %v364, 16
    %v366 = vadd.s32 %v365, %v363
    %v367 = vrot.slane %v366, 4
    %v368 = vadd.s32 %v366, %v367
    %v369 = vrot.slane %v368, 2
    %v370 = vadd.s32 %v368, %v369
    %v371 = vrot.slane %v370, 1
    %v372 = vadd.s32 %v370, %v371
    %s373 = vtos %v372
    %p374 = scmp.ge.s32.totalorder %s373, 4
    %s375 = scalar_select %p374, %s350, %s346
    %s376 = scalar_select %p374, %s347, %s350
    %s377 = ssub.s32 %s376, %s375
    %s378 = sshra.s32 %s377, 1
    %s379 = sadd.s32 %s375, %s378
    %v380 = vstv %s379
    %vm381 = vcmp.ge.s32.totalorder %v59, %v380
    %v382 = vsel %vm381, 1, 0
    %v383 = vsel %vm63, %v382, 0
    %v384 = vand.u32 %v383, 65535
    %v385 = vshrl.u32 %v383, 16
    %v386 = vcvt.s32.f32 %v384
    %v387 = vcvt.s32.f32 %v385
    %388 = vadd.xlane.f32.xlu0 %v386
    %v389 = vpop.xlane.xlu0 %388
    %390 = vadd.xlane.f32.xlu0 %v387
    %v391 = vpop.xlane.xlu0 %390
    %v392 = vcvt.f32.s32 %v389
    %v393 = vcvt.f32.s32 %v391
    %v394 = vshll.u32 %v393, 16
    %v395 = vadd.s32 %v394, %v392
    %v396 = vrot.slane %v395, 4
    %v397 = vadd.s32 %v395, %v396
    %v398 = vrot.slane %v397, 2
    %v399 = vadd.s32 %v397, %v398
    %v400 = vrot.slane %v399, 1
    %v401 = vadd.s32 %v399, %v400
    %s402 = vtos %v401
    %p403 = scmp.ge.s32.totalorder %s402, 4
    %s404 = scalar_select %p403, %s379, %s375
    %s405 = scalar_select %p403, %s376, %s379
    %s406 = ssub.s32 %s405, %s404
    %s407 = sshra.s32 %s406, 1
    %s408 = sadd.s32 %s404, %s407
    %v409 = vstv %s408
    %vm410 = vcmp.ge.s32.totalorder %v59, %v409
    %v411 = vsel %vm410, 1, 0
    %v412 = vsel %vm63, %v411, 0
    %v413 = vand.u32 %v412, 65535
    %v414 = vshrl.u32 %v412, 16
    %v415 = vcvt.s32.f32 %v413
    %v416 = vcvt.s32.f32 %v414
    %417 = vadd.xlane.f32.xlu0 %v415
    %v418 = vpop.xlane.xlu0 %417
    %419 = vadd.xlane.f32.xlu0 %v416
    %v420 = vpop.xlane.xlu0 %419
    %v421 = vcvt.f32.s32 %v418
    %v422 = vcvt.f32.s32 %v420
    %v423 = vshll.u32 %v422, 16
    %v424 = vadd.s32 %v423, %v421
    %v425 = vrot.slane %v424, 4
    %v426 = vadd.s32 %v424, %v425
    %v427 = vrot.slane %v426, 2
    %v428 = vadd.s32 %v426, %v427
    %v429 = vrot.slane %v428, 1
    %v430 = vadd.s32 %v428, %v429
    %s431 = vtos %v430
    %p432 = scmp.ge.s32.totalorder %s431, 4
    %s433 = scalar_select %p432, %s408, %s404
    %s434 = scalar_select %p432, %s405, %s408
    %s435 = ssub.s32 %s434, %s433
    %s436 = sshra.s32 %s435, 1
    %s437 = sadd.s32 %s433, %s436
    %v438 = vstv %s437
    %vm439 = vcmp.ge.s32.totalorder %v59, %v438
    %v440 = vsel %vm439, 1, 0
    %v441 = vsel %vm63, %v440, 0
    %v442 = vand.u32 %v441, 65535
    %v443 = vshrl.u32 %v441, 16
    %v444 = vcvt.s32.f32 %v442
    %v445 = vcvt.s32.f32 %v443
    %446 = vadd.xlane.f32.xlu0 %v444
    %v447 = vpop.xlane.xlu0 %446
    %448 = vadd.xlane.f32.xlu0 %v445
    %v449 = vpop.xlane.xlu0 %448
    %v450 = vcvt.f32.s32 %v447
    %v451 = vcvt.f32.s32 %v449
    %v452 = vshll.u32 %v451, 16
    %v453 = vadd.s32 %v452, %v450
    %v454 = vrot.slane %v453, 4
    %v455 = vadd.s32 %v453, %v454
    %v456 = vrot.slane %v455, 2
    %v457 = vadd.s32 %v455, %v456
    %v458 = vrot.slane %v457, 1
    %v459 = vadd.s32 %v457, %v458
    %s460 = vtos %v459
    %p461 = scmp.ge.s32.totalorder %s460, 4
    %s462 = scalar_select %p461, %s437, %s433
    %s463 = scalar_select %p461, %s434, %s437
    %s464 = ssub.s32 %s463, %s462
    %s465 = sshra.s32 %s464, 1
    %s466 = sadd.s32 %s462, %s465
    %v467 = vstv %s466
    %vm468 = vcmp.ge.s32.totalorder %v59, %v467
    %v469 = vsel %vm468, 1, 0
    %v470 = vsel %vm63, %v469, 0
    %v471 = vand.u32 %v470, 65535
    %v472 = vshrl.u32 %v470, 16
    %v473 = vcvt.s32.f32 %v471
    %v474 = vcvt.s32.f32 %v472
    %475 = vadd.xlane.f32.xlu0 %v473
    %v476 = vpop.xlane.xlu0 %475
    %477 = vadd.xlane.f32.xlu0 %v474
    %v478 = vpop.xlane.xlu0 %477
    %v479 = vcvt.f32.s32 %v476
    %v480 = vcvt.f32.s32 %v478
    %v481 = vshll.u32 %v480, 16
    %v482 = vadd.s32 %v481, %v479
    %v483 = vrot.slane %v482, 4
    %v484 = vadd.s32 %v482, %v483
    %v485 = vrot.slane %v484, 2
    %v486 = vadd.s32 %v484, %v485
    %v487 = vrot.slane %v486, 1
    %v488 = vadd.s32 %v486, %v487
    %s489 = vtos %v488
    %p490 = scmp.ge.s32.totalorder %s489, 4
    %s491 = scalar_select %p490, %s466, %s462
    %s492 = scalar_select %p490, %s463, %s466
    %s493 = ssub.s32 %s492, %s491
    %s494 = sshra.s32 %s493, 1
    %s495 = sadd.s32 %s491, %s494
    %v496 = vstv %s495
    %vm497 = vcmp.ge.s32.totalorder %v59, %v496
    %v498 = vsel %vm497, 1, 0
    %v499 = vsel %vm63, %v498, 0
    %v500 = vand.u32 %v499, 65535
    %v501 = vshrl.u32 %v499, 16
    %v502 = vcvt.s32.f32 %v500
    %v503 = vcvt.s32.f32 %v501
    %504 = vadd.xlane.f32.xlu0 %v502
    %v505 = vpop.xlane.xlu0 %504
    %506 = vadd.xlane.f32.xlu0 %v503
    %v507 = vpop.xlane.xlu0 %506
    %v508 = vcvt.f32.s32 %v505
    %v509 = vcvt.f32.s32 %v507
    %v510 = vshll.u32 %v509, 16
    %v511 = vadd.s32 %v510, %v508
    %v512 = vrot.slane %v511, 4
    %v513 = vadd.s32 %v511, %v512
    %v514 = vrot.slane %v513, 2
    %v515 = vadd.s32 %v513, %v514
    %v516 = vrot.slane %v515, 1
    %v517 = vadd.s32 %v515, %v516
    %s518 = vtos %v517
    %p519 = scmp.ge.s32.totalorder %s518, 4
    %s520 = scalar_select %p519, %s495, %s491
    %s521 = scalar_select %p519, %s492, %s495
    %s522 = ssub.s32 %s521, %s520
    %s523 = sshra.s32 %s522, 1
    %s524 = sadd.s32 %s520, %s523
    %v525 = vstv %s524
    %vm526 = vcmp.ge.s32.totalorder %v59, %v525
    %v527 = vsel %vm526, 1, 0
    %v528 = vsel %vm63, %v527, 0
    %v529 = vand.u32 %v528, 65535
    %v530 = vshrl.u32 %v528, 16
    %v531 = vcvt.s32.f32 %v529
    %v532 = vcvt.s32.f32 %v530
    %533 = vadd.xlane.f32.xlu0 %v531
    %v534 = vpop.xlane.xlu0 %533
    %535 = vadd.xlane.f32.xlu0 %v532
    %v536 = vpop.xlane.xlu0 %535
    %v537 = vcvt.f32.s32 %v534
    %v538 = vcvt.f32.s32 %v536
    %v539 = vshll.u32 %v538, 16
    %v540 = vadd.s32 %v539, %v537
    %v541 = vrot.slane %v540, 4
    %v542 = vadd.s32 %v540, %v541
    %v543 = vrot.slane %v542, 2
    %v544 = vadd.s32 %v542, %v543
    %v545 = vrot.slane %v544, 1
    %v546 = vadd.s32 %v544, %v545
    %s547 = vtos %v546
    %p548 = scmp.ge.s32.totalorder %s547, 4
    %s549 = scalar_select %p548, %s524, %s520
    %s550 = scalar_select %p548, %s521, %s524
    %s551 = ssub.s32 %s550, %s549
    %s552 = sshra.s32 %s551, 1
    %s553 = sadd.s32 %s549, %s552
    %v554 = vstv %s553
    %vm555 = vcmp.ge.s32.totalorder %v59, %v554
    %v556 = vsel %vm555, 1, 0
    %v557 = vsel %vm63, %v556, 0
    %v558 = vand.u32 %v557, 65535
    %v559 = vshrl.u32 %v557, 16
    %v560 = vcvt.s32.f32 %v558
    %v561 = vcvt.s32.f32 %v559
    %562 = vadd.xlane.f32.xlu0 %v560
    %v563 = vpop.xlane.xlu0 %562
    %564 = vadd.xlane.f32.xlu0 %v561
    %v565 = vpop.xlane.xlu0 %564
    %v566 = vcvt.f32.s32 %v563
    %v567 = vcvt.f32.s32 %v565
    %v568 = vshll.u32 %v567, 16
    %v569 = vadd.s32 %v568, %v566
    %v570 = vrot.slane %v569, 4
    %v571 = vadd.s32 %v569, %v570
    %v572 = vrot.slane %v571, 2
    %v573 = vadd.s32 %v571, %v572
    %v574 = vrot.slane %v573, 1
    %v575 = vadd.s32 %v573, %v574
    %s576 = vtos %v575
    %p577 = scmp.ge.s32.totalorder %s576, 4
    %s578 = scalar_select %p577, %s553, %s549
    %s579 = scalar_select %p577, %s550, %s553
    %s580 = ssub.s32 %s579, %s578
    %s581 = sshra.s32 %s580, 1
    %s582 = sadd.s32 %s578, %s581
    %v583 = vstv %s582
    %vm584 = vcmp.ge.s32.totalorder %v59, %v583
    %v585 = vsel %vm584, 1, 0
    %v586 = vsel %vm63, %v585, 0
    %v587 = vand.u32 %v586, 65535
    %v588 = vshrl.u32 %v586, 16
    %v589 = vcvt.s32.f32 %v587
    %v590 = vcvt.s32.f32 %v588
    %591 = vadd.xlane.f32.xlu0 %v589
    %v592 = vpop.xlane.xlu0 %591
    %593 = vadd.xlane.f32.xlu0 %v590
    %v594 = vpop.xlane.xlu0 %593
    %v595 = vcvt.f32.s32 %v592
    %v596 = vcvt.f32.s32 %v594
    %v597 = vshll.u32 %v596, 16
    %v598 = vadd.s32 %v597, %v595
    %v599 = vrot.slane %v598, 4
    %v600 = vadd.s32 %v598, %v599
    %v601 = vrot.slane %v600, 2
    %v602 = vadd.s32 %v600, %v601
    %v603 = vrot.slane %v602, 1
    %v604 = vadd.s32 %v602, %v603
    %s605 = vtos %v604
    %p606 = scmp.ge.s32.totalorder %s605, 4
    %s607 = scalar_select %p606, %s582, %s578
    %s608 = scalar_select %p606, %s579, %s582
    %s609 = ssub.s32 %s608, %s607
    %s610 = sshra.s32 %s609, 1
    %s611 = sadd.s32 %s607, %s610
    %v612 = vstv %s611
    %vm613 = vcmp.ge.s32.totalorder %v59, %v612
    %v614 = vsel %vm613, 1, 0
    %v615 = vsel %vm63, %v614, 0
    %v616 = vand.u32 %v615, 65535
    %v617 = vshrl.u32 %v615, 16
    %v618 = vcvt.s32.f32 %v616
    %v619 = vcvt.s32.f32 %v617
    %620 = vadd.xlane.f32.xlu0 %v618
    %v621 = vpop.xlane.xlu0 %620
    %622 = vadd.xlane.f32.xlu0 %v619
    %v623 = vpop.xlane.xlu0 %622
    %v624 = vcvt.f32.s32 %v621
    %v625 = vcvt.f32.s32 %v623
    %v626 = vshll.u32 %v625, 16
    %v627 = vadd.s32 %v626, %v624
    %v628 = vrot.slane %v627, 4
    %v629 = vadd.s32 %v627, %v628
    %v630 = vrot.slane %v629, 2
    %v631 = vadd.s32 %v629, %v630
    %v632 = vrot.slane %v631, 1
    %v633 = vadd.s32 %v631, %v632
    %s634 = vtos %v633
    %p635 = scmp.ge.s32.totalorder %s634, 4
    %s636 = scalar_select %p635, %s611, %s607
    %s637 = scalar_select %p635, %s608, %s611
    %s638 = ssub.s32 %s637, %s636
    %s639 = sshra.s32 %s638, 1
    %s640 = sadd.s32 %s636, %s639
    %v641 = vstv %s640
    %vm642 = vcmp.ge.s32.totalorder %v59, %v641
    %v643 = vsel %vm642, 1, 0
    %v644 = vsel %vm63, %v643, 0
    %v645 = vand.u32 %v644, 65535
    %v646 = vshrl.u32 %v644, 16
    %v647 = vcvt.s32.f32 %v645
    %v648 = vcvt.s32.f32 %v646
    %649 = vadd.xlane.f32.xlu0 %v647
    %v650 = vpop.xlane.xlu0 %649
    %651 = vadd.xlane.f32.xlu0 %v648
    %v652 = vpop.xlane.xlu0 %651
    %v653 = vcvt.f32.s32 %v650
    %v654 = vcvt.f32.s32 %v652
    %v655 = vshll.u32 %v654, 16
    %v656 = vadd.s32 %v655, %v653
    %v657 = vrot.slane %v656, 4
    %v658 = vadd.s32 %v656, %v657
    %v659 = vrot.slane %v658, 2
    %v660 = vadd.s32 %v658, %v659
    %v661 = vrot.slane %v660, 1
    %v662 = vadd.s32 %v660, %v661
    %s663 = vtos %v662
    %p664 = scmp.ge.s32.totalorder %s663, 4
    %s665 = scalar_select %p664, %s640, %s636
    %s666 = scalar_select %p664, %s637, %s640
    %s667 = ssub.s32 %s666, %s665
    %s668 = sshra.s32 %s667, 1
    %s669 = sadd.s32 %s665, %s668
    %v670 = vstv %s669
    %vm671 = vcmp.ge.s32.totalorder %v59, %v670
    %v672 = vsel %vm671, 1, 0
    %v673 = vsel %vm63, %v672, 0
    %v674 = vand.u32 %v673, 65535
    %v675 = vshrl.u32 %v673, 16
    %v676 = vcvt.s32.f32 %v674
    %v677 = vcvt.s32.f32 %v675
    %678 = vadd.xlane.f32.xlu0 %v676
    %v679 = vpop.xlane.xlu0 %678
    %680 = vadd.xlane.f32.xlu0 %v677
    %v681 = vpop.xlane.xlu0 %680
    %v682 = vcvt.f32.s32 %v679
    %v683 = vcvt.f32.s32 %v681
    %v684 = vshll.u32 %v683, 16
    %v685 = vadd.s32 %v684, %v682
    %v686 = vrot.slane %v685, 4
    %v687 = vadd.s32 %v685, %v686
    %v688 = vrot.slane %v687, 2
    %v689 = vadd.s32 %v687, %v688
    %v690 = vrot.slane %v689, 1
    %v691 = vadd.s32 %v689, %v690
    %s692 = vtos %v691
    %p693 = scmp.ge.s32.totalorder %s692, 4
    %s694 = scalar_select %p693, %s669, %s665
    %s695 = scalar_select %p693, %s666, %s669
    %s696 = ssub.s32 %s695, %s694
    %s697 = sshra.s32 %s696, 1
    %s698 = sadd.s32 %s694, %s697
    %v699 = vstv %s698
    %vm700 = vcmp.ge.s32.totalorder %v59, %v699
    %v701 = vsel %vm700, 1, 0
    %v702 = vsel %vm63, %v701, 0
    %v703 = vand.u32 %v702, 65535
    %v704 = vshrl.u32 %v702, 16
    %v705 = vcvt.s32.f32 %v703
    %v706 = vcvt.s32.f32 %v704
    %707 = vadd.xlane.f32.xlu0 %v705
    %v708 = vpop.xlane.xlu0 %707
    %709 = vadd.xlane.f32.xlu0 %v706
    %v710 = vpop.xlane.xlu0 %709
    %v711 = vcvt.f32.s32 %v708
    %v712 = vcvt.f32.s32 %v710
    %v713 = vshll.u32 %v712, 16
    %v714 = vadd.s32 %v713, %v711
    %v715 = vrot.slane %v714, 4
    %v716 = vadd.s32 %v714, %v715
    %v717 = vrot.slane %v716, 2
    %v718 = vadd.s32 %v716, %v717
    %v719 = vrot.slane %v718, 1
    %v720 = vadd.s32 %v718, %v719
    %s721 = vtos %v720
    %p722 = scmp.ge.s32.totalorder %s721, 4
    %s723 = scalar_select %p722, %s698, %s694
    %s724 = scalar_select %p722, %s695, %s698
    %s725 = ssub.s32 %s724, %s723
    %s726 = sshra.s32 %s725, 1
    %s727 = sadd.s32 %s723, %s726
    %v728 = vstv %s727
    %vm729 = vcmp.ge.s32.totalorder %v59, %v728
    %v730 = vsel %vm729, 1, 0
    %v731 = vsel %vm63, %v730, 0
    %v732 = vand.u32 %v731, 65535
    %v733 = vshrl.u32 %v731, 16
    %v734 = vcvt.s32.f32 %v732
    %v735 = vcvt.s32.f32 %v733
    %736 = vadd.xlane.f32.xlu0 %v734
    %v737 = vpop.xlane.xlu0 %736
    %738 = vadd.xlane.f32.xlu0 %v735
    %v739 = vpop.xlane.xlu0 %738
    %v740 = vcvt.f32.s32 %v737
    %v741 = vcvt.f32.s32 %v739
    %v742 = vshll.u32 %v741, 16
    %v743 = vadd.s32 %v742, %v740
    %v744 = vrot.slane %v743, 4
    %v745 = vadd.s32 %v743, %v744
    %v746 = vrot.slane %v745, 2
    %v747 = vadd.s32 %v745, %v746
    %v748 = vrot.slane %v747, 1
    %v749 = vadd.s32 %v747, %v748
    %s750 = vtos %v749
    %p751 = scmp.ge.s32.totalorder %s750, 4
    %s752 = scalar_select %p751, %s727, %s723
    %s753 = scalar_select %p751, %s724, %s727
    %s754 = ssub.s32 %s753, %s752
    %s755 = sshra.s32 %s754, 1
    %s756 = sadd.s32 %s752, %s755
    %v757 = vstv %s756
    %vm758 = vcmp.ge.s32.totalorder %v59, %v757
    %v759 = vsel %vm758, 1, 0
    %v760 = vsel %vm63, %v759, 0
    %v761 = vand.u32 %v760, 65535
    %v762 = vshrl.u32 %v760, 16
    %v763 = vcvt.s32.f32 %v761
    %v764 = vcvt.s32.f32 %v762
    %765 = vadd.xlane.f32.xlu0 %v763
    %v766 = vpop.xlane.xlu0 %765
    %767 = vadd.xlane.f32.xlu0 %v764
    %v768 = vpop.xlane.xlu0 %767
    %v769 = vcvt.f32.s32 %v766
    %v770 = vcvt.f32.s32 %v768
    %v771 = vshll.u32 %v770, 16
    %v772 = vadd.s32 %v771, %v769
    %v773 = vrot.slane %v772, 4
    %v774 = vadd.s32 %v772, %v773
    %v775 = vrot.slane %v774, 2
    %v776 = vadd.s32 %v774, %v775
    %v777 = vrot.slane %v776, 1
    %v778 = vadd.s32 %v776, %v777
    %s779 = vtos %v778
    %p780 = scmp.ge.s32.totalorder %s779, 4
    %s781 = scalar_select %p780, %s756, %s752
    %s782 = scalar_select %p780, %s753, %s756
    %s783 = ssub.s32 %s782, %s781
    %s784 = sshra.s32 %s783, 1
    %s785 = sadd.s32 %s781, %s784
    %v786 = vstv %s785
    %vm787 = vcmp.ge.s32.totalorder %v59, %v786
    %v788 = vsel %vm787, 1, 0
    %v789 = vsel %vm63, %v788, 0
    %v790 = vand.u32 %v789, 65535
    %v791 = vshrl.u32 %v789, 16
    %v792 = vcvt.s32.f32 %v790
    %v793 = vcvt.s32.f32 %v791
    %794 = vadd.xlane.f32.xlu0 %v792
    %v795 = vpop.xlane.xlu0 %794
    %796 = vadd.xlane.f32.xlu0 %v793
    %v797 = vpop.xlane.xlu0 %796
    %v798 = vcvt.f32.s32 %v795
    %v799 = vcvt.f32.s32 %v797
    %v800 = vshll.u32 %v799, 16
    %v801 = vadd.s32 %v800, %v798
    %v802 = vrot.slane %v801, 4
    %v803 = vadd.s32 %v801, %v802
    %v804 = vrot.slane %v803, 2
    %v805 = vadd.s32 %v803, %v804
    %v806 = vrot.slane %v805, 1
    %v807 = vadd.s32 %v805, %v806
    %s808 = vtos %v807
    %p809 = scmp.ge.s32.totalorder %s808, 4
    %s810 = scalar_select %p809, %s785, %s781
    %s811 = scalar_select %p809, %s782, %s785
    %s812 = ssub.s32 %s811, %s810
    %s813 = sshra.s32 %s812, 1
    %s814 = sadd.s32 %s810, %s813
    %v815 = vstv %s814
    %vm816 = vcmp.ge.s32.totalorder %v59, %v815
    %v817 = vsel %vm816, 1, 0
    %v818 = vsel %vm63, %v817, 0
    %v819 = vand.u32 %v818, 65535
    %v820 = vshrl.u32 %v818, 16
    %v821 = vcvt.s32.f32 %v819
    %v822 = vcvt.s32.f32 %v820
    %823 = vadd.xlane.f32.xlu0 %v821
    %v824 = vpop.xlane.xlu0 %823
    %825 = vadd.xlane.f32.xlu0 %v822
    %v826 = vpop.xlane.xlu0 %825
    %v827 = vcvt.f32.s32 %v824
    %v828 = vcvt.f32.s32 %v826
    %v829 = vshll.u32 %v828, 16
    %v830 = vadd.s32 %v829, %v827
    %v831 = vrot.slane %v830, 4
    %v832 = vadd.s32 %v830, %v831
    %v833 = vrot.slane %v832, 2
    %v834 = vadd.s32 %v832, %v833
    %v835 = vrot.slane %v834, 1
    %v836 = vadd.s32 %v834, %v835
    %s837 = vtos %v836
    %p838 = scmp.ge.s32.totalorder %s837, 4
    %s839 = scalar_select %p838, %s814, %s810
    %s840 = scalar_select %p838, %s811, %s814
    %s841 = ssub.s32 %s840, %s839
    %s842 = sshra.s32 %s841, 1
    %s843 = sadd.s32 %s839, %s842
    %v844 = vstv %s843
    %vm845 = vcmp.ge.s32.totalorder %v59, %v844
    %v846 = vsel %vm845, 1, 0
    %v847 = vsel %vm63, %v846, 0
    %v848 = vand.u32 %v847, 65535
    %v849 = vshrl.u32 %v847, 16
    %v850 = vcvt.s32.f32 %v848
    %v851 = vcvt.s32.f32 %v849
    %852 = vadd.xlane.f32.xlu0 %v850
    %v853 = vpop.xlane.xlu0 %852
    %854 = vadd.xlane.f32.xlu0 %v851
    %v855 = vpop.xlane.xlu0 %854
    %v856 = vcvt.f32.s32 %v853
    %v857 = vcvt.f32.s32 %v855
    %v858 = vshll.u32 %v857, 16
    %v859 = vadd.s32 %v858, %v856
    %v860 = vrot.slane %v859, 4
    %v861 = vadd.s32 %v859, %v860
    %v862 = vrot.slane %v861, 2
    %v863 = vadd.s32 %v861, %v862
    %v864 = vrot.slane %v863, 1
    %v865 = vadd.s32 %v863, %v864
    %s866 = vtos %v865
    %p867 = scmp.ge.s32.totalorder %s866, 4
    %s868 = scalar_select %p867, %s843, %s839
    %s869 = scalar_select %p867, %s840, %s843
    %s870 = ssub.s32 %s869, %s868
    %s871 = sshra.s32 %s870, 1
    %s872 = sadd.s32 %s868, %s871
    %v873 = vstv %s872
    %vm874 = vcmp.ge.s32.totalorder %v59, %v873
    %v875 = vsel %vm874, 1, 0
    %v876 = vsel %vm63, %v875, 0
    %v877 = vand.u32 %v876, 65535
    %v878 = vshrl.u32 %v876, 16
    %v879 = vcvt.s32.f32 %v877
    %v880 = vcvt.s32.f32 %v878
    %881 = vadd.xlane.f32.xlu0 %v879
    %v882 = vpop.xlane.xlu0 %881
    %883 = vadd.xlane.f32.xlu0 %v880
    %v884 = vpop.xlane.xlu0 %883
    %v885 = vcvt.f32.s32 %v882
    %v886 = vcvt.f32.s32 %v884
    %v887 = vshll.u32 %v886, 16
    %v888 = vadd.s32 %v887, %v885
    %v889 = vrot.slane %v888, 4
    %v890 = vadd.s32 %v888, %v889
    %v891 = vrot.slane %v890, 2
    %v892 = vadd.s32 %v890, %v891
    %v893 = vrot.slane %v892, 1
    %v894 = vadd.s32 %v892, %v893
    %s895 = vtos %v894
    %p896 = scmp.ge.s32.totalorder %s895, 4
    %s897 = scalar_select %p896, %s872, %s868
    %s898 = scalar_select %p896, %s869, %s872
    %s899 = ssub.s32 %s898, %s897
    %s900 = sshra.s32 %s899, 1
    %s901 = sadd.s32 %s897, %s900
    %v902 = vstv %s901
    %vm903 = vcmp.ge.s32.totalorder %v59, %v902
    %v904 = vsel %vm903, 1, 0
    %v905 = vsel %vm63, %v904, 0
    %v906 = vand.u32 %v905, 65535
    %v907 = vshrl.u32 %v905, 16
    %v908 = vcvt.s32.f32 %v906
    %v909 = vcvt.s32.f32 %v907
    %910 = vadd.xlane.f32.xlu0 %v908
    %v911 = vpop.xlane.xlu0 %910
    %912 = vadd.xlane.f32.xlu0 %v909
    %v913 = vpop.xlane.xlu0 %912
    %v914 = vcvt.f32.s32 %v911
    %v915 = vcvt.f32.s32 %v913
    %v916 = vshll.u32 %v915, 16
    %v917 = vadd.s32 %v916, %v914
    %v918 = vrot.slane %v917, 4
    %v919 = vadd.s32 %v917, %v918
    %v920 = vrot.slane %v919, 2
    %v921 = vadd.s32 %v919, %v920
    %v922 = vrot.slane %v921, 1
    %v923 = vadd.s32 %v921, %v922
    %s924 = vtos %v923
    %p925 = scmp.ge.s32.totalorder %s924, 4
    %s926 = scalar_select %p925, %s901, %s897
    %s927 = scalar_select %p925, %s898, %s901
    %s928 = ssub.s32 %s927, %s926
    %s929 = sshra.s32 %s928, 1
    %s930 = sadd.s32 %s926, %s929
    %v931 = vstv %s930
    %vm932 = vcmp.ge.s32.totalorder %v59, %v931
    %v933 = vsel %vm932, 1, 0
    %v934 = vsel %vm63, %v933, 0
    %v935 = vand.u32 %v934, 65535
    %v936 = vshrl.u32 %v934, 16
    %v937 = vcvt.s32.f32 %v935
    %v938 = vcvt.s32.f32 %v936
    %939 = vadd.xlane.f32.xlu0 %v937
    %v940 = vpop.xlane.xlu0 %939
    %941 = vadd.xlane.f32.xlu0 %v938
    %v942 = vpop.xlane.xlu0 %941
    %v943 = vcvt.f32.s32 %v940
    %v944 = vcvt.f32.s32 %v942
    %v945 = vshll.u32 %v944, 16
    %v946 = vadd.s32 %v945, %v943
    %v947 = vrot.slane %v946, 4
    %v948 = vadd.s32 %v946, %v947
    %v949 = vrot.slane %v948, 2
    %v950 = vadd.s32 %v948, %v949
    %v951 = vrot.slane %v950, 1
    %v952 = vadd.s32 %v950, %v951
    %s953 = vtos %v952
    %p954 = scmp.ge.s32.totalorder %s953, 4
    %s955 = scalar_select %p954, %s930, %s926
    %v956 = vstv %s955
    %vm957 = vcmp.lt.s32.totalorder %v59, %v956
    %v958 = vsel %vm957, %v59, 0.0
    %v959 = vadd.f32 %v57, %v958
    %960 = vst.msk [vmem:[#allocation7] sm:$0x3] %vm63, %v959
    // Predicated region
    $region18: #{tpu_custom_call.1} parent=1 // pred_check
      _
    $region19: #{tpu_custom_call.1} parent=1 // pred_check_branch
      %962 = sbr.rel (0) target = $region21
    $region20: #{tpu_custom_call.1} parent=1 // pred_region
      %s964 = ssub.s32 32, 32
      %965 = vsyncadd [#allocation4], %s964
      %s967 = sshll.u32 [#allocation7], 4
      %s968 = int_to_ptr.vmem [resolvable:$true] %s967
      %970 = dma.vmem_to_hbm [thread:$0]  %s968, 32, %s2, [#allocation4]
    $region21: #{tpu_custom_call.1} parent=1 // pred_fallthru
      _
    // Predicated region
    $region22: #{tpu_custom_call.1} parent=1 // pred_check
      _
    $region23: #{tpu_custom_call.1} parent=1 // pred_check_branch
      %972 = sbr.rel (0) target = $region25
    $region24: #{tpu_custom_call.1} parent=1 // pred_region
      %973 = dma.done [#allocation4], 32
    $region25: #{tpu_custom_call.1} parent=1 // pred_fallthru
      _
    %974 = vsyncpa [#allocation3], 1
    %975 = vsyncpa [#allocation6], 1
    %976 = vsyncpa [#allocation4], 1

</llo_original>
